<compile_context>
chip_gen: v6e
topology: v6e:2x2x1
jax: 0.10.0
libtpu: 0.0.40
codegen_flags: <defaults>
</compile_context>

<pallas_src>
import functools

import jax
import jax.numpy as jnp
from jax.experimental import pallas as pl
from jax.experimental.pallas import tpu as pltpu


def _round_up(x, m):
    return (x + m - 1) // m * m


def _mlp_kernel(x_ref, w1_ref, b1_ref, w2_ref, b2_ref, o_ref, acc_ref):
    """Fused two-layer MLP tile.

    Grid = (batch_tiles, k_tiles); axis 1 (dim_in chunks) is the reduction.
    acc_ref is an f32 VMEM accumulator resident across the k axis.
    """
    k = pl.program_id(1)

    @pl.when(k == 0)
    def _():
        acc_ref[...] = jnp.zeros_like(acc_ref)

    # layer_input partial product: (tm, tk) bf16 @ (tk, dh) bf16, f32 accumulate.
    acc_ref[...] += jnp.dot(x_ref[...], w1_ref[...],
                            preferred_element_type=jnp.float32)

    @pl.when(k == pl.num_programs(1) - 1)
    def _():
        # dropout: nn.Dropout() is identity at inference time.
        # TODO(synk): training-mode dropout (p=0.5 mask via pltpu.prng_*) not emitted.
        h = jnp.maximum(acc_ref[...] + b1_ref[...], 0.0)          # f32 elementwise
        out = jnp.dot(h.astype(w2_ref.dtype), w2_ref[...],        # bf16 on the MXU
                      preferred_element_type=jnp.float32)
        o_ref[...] = (out + b2_ref[...]).astype(o_ref.dtype)


def prepare_params(w1, b1, w2, b2, *, matmul_dtype=jnp.bfloat16):
    """One-time conversion of PyTorch-layout params (hoisted out of the forward).

    w1: (dim_hidden, dim_in), b1: (dim_hidden,)
    w2: (dim_out, dim_hidden), b2: (dim_out,)

    Returns (in, out)-layout, lane-padded (multiples of 128) parameters:
      w1: (din_pad, dh_pad) bf16, b1: (1, dh_pad) f32
      w2: (dh_pad, do_pad) bf16, b2: (1, do_pad) f32
    Zero padding keeps the math exact (padded hidden units are relu(0+0)=0 and
    multiply zero rows of W2; padded outputs are sliced off in the wrapper).
    """
    dim_hidden, dim_in = w1.shape
    dim_out = w2.shape[0]
    din_pad = _round_up(dim_in, 128)
    dh_pad = _round_up(dim_hidden, 128)
    do_pad = _round_up(dim_out, 128)

    w1_t = jnp.zeros((din_pad, dh_pad), matmul_dtype)
    w1_t = w1_t.at[:dim_in, :dim_hidden].set(w1.T.astype(matmul_dtype))
    w2_t = jnp.zeros((dh_pad, do_pad), matmul_dtype)
    w2_t = w2_t.at[:dim_hidden, :dim_out].set(w2.T.astype(matmul_dtype))
    b1_p = jnp.zeros((1, dh_pad), jnp.float32).at[0, :dim_hidden].set(
        b1.astype(jnp.float32))
    b2_p = jnp.zeros((1, do_pad), jnp.float32).at[0, :dim_out].set(
        b2.astype(jnp.float32))
    return {"w1": w1_t, "b1": b1_p, "w2": w2_t, "b2": b2_p,
            "dim_in": dim_in, "dim_out": dim_out}


@functools.partial(jax.jit, static_argnames=("dim_out",))
def _mlp_forward(x, w1_t, b1, w2_t, b2, *, dim_out):
    B = x.shape[0]
    x_flat = x.reshape(B, -1)                         # (B, C*H*W)

    din_pad = w1_t.shape[0]
    dh_pad = w1_t.shape[1]
    do_pad = w2_t.shape[1]

    # Pad dim_in to the lane-padded weight width (no-op when already aligned).
    if x_flat.shape[1] != din_pad:
        x_flat = jnp.pad(x_flat, ((0, 0), (0, din_pad - x_flat.shape[1])))
    # bf16 matmul operands: MXU-native on all generations, halves x DMA bytes.
    x_flat = x_flat.astype(w1_t.dtype)

    # Batch tiling: multiple of 16 (bf16 sublane pack), up to 128 for MXU rows.
    tm = min(128, _round_up(B, 16))
    b_pad = _round_up(B, tm)
    if b_pad != B:
        x_flat = jnp.pad(x_flat, ((0, b_pad - B), (0, 0)))

    # K (dim_in) tiling so W1 is streamed in bounded blocks (v7x VMEM-safe).
    if din_pad <= 512:
        tk = din_pad
    else:
        tk = next(c for c in (512, 256, 128) if din_pad % c == 0)

    grid = (b_pad // tm, din_pad // tk)

    out = pl.pallas_call(
        _mlp_kernel,
        out_shape=jax.ShapeDtypeStruct((b_pad, do_pad), jnp.float32),
        grid_spec=pltpu.PrefetchScalarGridSpec(
            num_scalar_prefetch=0,
            grid=grid,
            in_specs=[
                pl.BlockSpec((tm, tk), lambda i, k: (i, k)),        # x tile
                pl.BlockSpec((tk, dh_pad), lambda i, k: (k, 0)),    # W1 K-block
                pl.BlockSpec((1, dh_pad), lambda i, k: (0, 0)),     # b1 (resident)
                pl.BlockSpec((dh_pad, do_pad), lambda i, k: (0, 0)),  # W2 (resident)
                pl.BlockSpec((1, do_pad), lambda i, k: (0, 0)),     # b2 (resident)
            ],
            out_specs=pl.BlockSpec((tm, do_pad), lambda i, k: (i, 0)),
            scratch_shapes=[pltpu.VMEM((tm, dh_pad), jnp.float32)],
        ),
        compiler_params=pltpu.CompilerParams(
            dimension_semantics=("parallel", "arbitrary"),
            vmem_limit_bytes=32 * 1024 * 1024,
        ),
    )(x_flat, w1_t, b1, w2_t, b2)

    # Strip batch padding and output lane padding.
    return out[:B, :dim_out]


def mlp_forward(x, params):
    """x: (B, C, H, W); params from prepare_params()."""
    return _mlp_forward(x, params["w1"], params["b1"], params["w2"], params["b2"],
                        dim_out=params["dim_out"])


def _init_linear(key, fan_in, fan_out, dtype=jnp.float32):
    """Deterministic PyTorch-style nn.Linear init: U(-1/sqrt(fan_in), 1/sqrt(fan_in))."""
    kw, kb = jax.random.split(key)
    bound = 1.0 / jnp.sqrt(jnp.asarray(fan_in, dtype))
    w = jax.random.uniform(kw, (fan_out, fan_in), dtype, -bound, bound)
    b = jax.random.uniform(kb, (fan_out,), dtype, -bound, bound)
    return w, b


if __name__ == "__main__":
    # Small shapes consistent with the forward: x is an NCHW image batch.
    B, C, H, W = 2, 4, 16, 16
    dim_in = C * H * W          # 1024
    dim_hidden = 64
    dim_out = 10

    key = jax.random.PRNGKey(0)
    kx, k1, k2 = jax.random.split(key, 3)

    x = jax.random.normal(kx, (B, C, H, W), jnp.float32)
    w1, b1 = _init_linear(k1, dim_in, dim_hidden)
    w2, b2 = _init_linear(k2, dim_hidden, dim_out)

    params = prepare_params(w1, b1, w2, b2)   # transpose/pad hoisted out of forward
    out = mlp_forward(x, params)
    out = jax.block_until_ready(out)

    # Reference in plain f32 JAX (eval-mode dropout == identity). The kernel uses
    # bf16 matmul operands with f32 accumulation, so allow bf16-level rounding.
    x_flat = x.reshape(B, dim_in)
    ref = jnp.maximum(x_flat @ w1.T + b1, 0.0) @ w2.T + b2
    assert out.shape == (B, dim_out)
    assert jnp.allclose(out, ref, atol=3e-2, rtol=3e-2), \
        float(jnp.max(jnp.abs(out - ref)))

    print("KERNEL_OK")
</pallas_src>

<mosaic_0001>
module attributes {stable_mosaic.version = 11 : i64} {
  func.func @_mlp_kernel(%arg0: i32, %arg1: i32, %arg2: memref<16x512xbf16, #tpu.memory_space<vmem>>, %arg3: memref<512x128xbf16, #tpu.memory_space<vmem>>, %arg4: memref<1x128xf32, #tpu.memory_space<vmem>>, %arg5: memref<128x128xbf16, #tpu.memory_space<vmem>>, %arg6: memref<1x128xf32, #tpu.memory_space<vmem>>, %arg7: memref<16x128xf32, #tpu.memory_space<vmem>>, %arg8: memref<16x128xf32, #tpu.memory_space<vmem>>) attributes {dimension_semantics = [#tpu.dimension_semantics<parallel>, #tpu.dimension_semantics<arbitrary>], iteration_bounds = array<i64: 1, 2>, scalar_prefetch = 0 : i64, scratch_operands = 1 : i64, tpu.core_type = #tpu.core_type<tc>, window_params = [{transform_indices = @transform_0, window_bounds = array<i64: 16, 512>}, {transform_indices = @transform_1, window_bounds = array<i64: 512, 128>}, {pipeline_mode = #tpu.pipeline_mode<synchronous>, transform_indices = @transform_2, window_bounds = array<i64: 1, 128>}, {pipeline_mode = #tpu.pipeline_mode<synchronous>, transform_indices = @transform_3, window_bounds = array<i64: 128, 128>}, {pipeline_mode = #tpu.pipeline_mode<synchronous>, transform_indices = @transform_4, window_bounds = array<i64: 1, 128>}, {transform_indices = @transform_5, window_bounds = array<i64: 16, 128>}]} {
    %c0_i32 = arith.constant 0 : i32
    %0 = arith.cmpi eq, %arg1, %c0_i32 : i32
    %1 = arith.extui %0 : i1 to i32
    %c0_i32_0 = arith.constant 0 : i32
    %2 = arith.cmpi ne, %1, %c0_i32_0 : i32
    scf.if %2 {
      %cst_9 = arith.constant 0.000000e+00 : f32
      %12 = vector.broadcast %cst_9 : f32 to vector<16x128xf32>
      %c0_10 = arith.constant 0 : index
      %c0_11 = arith.constant 0 : index
      %13 = vector.load %arg8[%c0_10, %c0_11] : memref<16x128xf32, #tpu.memory_space<vmem>>, vector<16x128xf32>
      tpu.vector_store %arg8[%c0_10, %c0_11], %12 {strides = array<i32>} : memref<16x128xf32, #tpu.memory_space<vmem>>, vector<16x128xf32>,
    } else {
    }
    %c0 = arith.constant 0 : index
    %c0_1 = arith.constant 0 : index
    %3 = vector.load %arg8[%c0, %c0_1] : memref<16x128xf32, #tpu.memory_space<vmem>>, vector<16x128xf32>
    %c0_2 = arith.constant 0 : index
    %c0_3 = arith.constant 0 : index
    %4 = vector.load %arg2[%c0_2, %c0_3] : memref<16x512xbf16, #tpu.memory_space<vmem>>, vector<16x512xbf16>
    %c0_4 = arith.constant 0 : index
    %c0_5 = arith.constant 0 : index
    %5 = vector.load %arg3[%c0_4, %c0_5] : memref<512x128xbf16, #tpu.memory_space<vmem>>, vector<512x128xbf16>
    %cst = arith.constant dense<0.000000e+00> : vector<16x128xf32>
    %6 = tpu.matmul %4, %5, %cst {dimension_numbers = #tpu.dot_dimension_numbers<[1], [0], [0], [1], [0, 0, 1, 1], [], []>} : vector<16x512xbf16>, vector<512x128xbf16>, vector<16x128xf32> -> vector<16x128xf32>
    %7 = arith.addf %3, %6 : vector<16x128xf32>
    %c0_6 = arith.constant 0 : index
    %c0_7 = arith.constant 0 : index
    %8 = vector.load %arg8[%c0_6, %c0_7] : memref<16x128xf32, #tpu.memory_space<vmem>>, vector<16x128xf32>
    tpu.vector_store %arg8[%c0_6, %c0_7], %7 {strides = array<i32>} : memref<16x128xf32, #tpu.memory_space<vmem>>, vector<16x128xf32>,
    %c1_i32 = arith.constant 1 : i32
    %9 = arith.cmpi eq, %arg1, %c1_i32 : i32
    %10 = arith.extui %9 : i1 to i32
    %c0_i32_8 = arith.constant 0 : i32
    %11 = arith.cmpi ne, %10, %c0_i32_8 : i32
    scf.if %11 {
      %c0_9 = arith.constant 0 : index
      %c0_10 = arith.constant 0 : index
      %12 = vector.load %arg8[%c0_9, %c0_10] : memref<16x128xf32, #tpu.memory_space<vmem>>, vector<16x128xf32>
      %c0_11 = arith.constant 0 : index
      %c0_12 = arith.constant 0 : index
      %13 = vector.load %arg4[%c0_11, %c0_12] : memref<1x128xf32, #tpu.memory_space<vmem>>, vector<1x128xf32>
      %14 = vector.broadcast %13 : vector<1x128xf32> to vector<16x128xf32>
      %15 = arith.addf %12, %14 : vector<16x128xf32>
      %cst_13 = arith.constant 0.000000e+00 : f32
      %16 = vector.broadcast %cst_13 : f32 to vector<16x128xf32>
      %17 = arith.maximumf %15, %16 : vector<16x128xf32>
      %18 = arith.truncf %17 : vector<16x128xf32> to vector<16x128xbf16>
      %c0_14 = arith.constant 0 : index
      %c0_15 = arith.constant 0 : index
      %19 = vector.load %arg5[%c0_14, %c0_15] : memref<128x128xbf16, #tpu.memory_space<vmem>>, vector<128x128xbf16>
      %cst_16 = arith.constant dense<0.000000e+00> : vector<16x128xf32>
      %20 = tpu.matmul %18, %19, %cst_16 {dimension_numbers = #tpu.dot_dimension_numbers<[1], [0], [0], [1], [0, 0, 1, 1], [], []>} : vector<16x128xbf16>, vector<128x128xbf16>, vector<16x128xf32> -> vector<16x128xf32>
      %c0_17 = arith.constant 0 : index
      %c0_18 = arith.constant 0 : index
      %21 = vector.load %arg6[%c0_17, %c0_18] : memref<1x128xf32, #tpu.memory_space<vmem>>, vector<1x128xf32>
      %22 = vector.broadcast %21 : vector<1x128xf32> to vector<16x128xf32>
      %23 = arith.addf %20, %22 : vector<16x128xf32>
      %c0_19 = arith.constant 0 : index
      %c0_20 = arith.constant 0 : index
      %24 = vector.load %arg7[%c0_19, %c0_20] : memref<16x128xf32, #tpu.memory_space<vmem>>, vector<16x128xf32>
      tpu.vector_store %arg7[%c0_19, %c0_20], %23 {strides = array<i32>} : memref<16x128xf32, #tpu.memory_space<vmem>>, vector<16x128xf32>,
    } else {
    }
    return
  }
  func.func @transform_0(%arg0: i32, %arg1: i32) -> (i32, i32) {
    %c0_i32 = arith.constant 0 : i32
    return %arg0, %arg1 : i32, i32
  }
  func.func @transform_1(%arg0: i32, %arg1: i32) -> (i32, i32) {
    %c0_i32 = arith.constant 0 : i32
    %c0_i32_0 = arith.constant 0 : i32
    return %arg1, %c0_i32 : i32, i32
  }
  func.func @transform_2(%arg0: i32, %arg1: i32) -> (i32, i32) {
    %c0_i32 = arith.constant 0 : i32
    %c0_i32_0 = arith.constant 0 : i32
    %c0_i32_1 = arith.constant 0 : i32
    return %c0_i32, %c0_i32_0 : i32, i32
  }
  func.func @transform_3(%arg0: i32, %arg1: i32) -> (i32, i32) {
    %c0_i32 = arith.constant 0 : i32
    %c0_i32_0 = arith.constant 0 : i32
    %c0_i32_1 = arith.constant 0 : i32
    return %c0_i32, %c0_i32_0 : i32, i32
  }
  func.func @transform_4(%arg0: i32, %arg1: i32) -> (i32, i32) {
    %c0_i32 = arith.constant 0 : i32
    %c0_i32_0 = arith.constant 0 : i32
    %c0_i32_1 = arith.constant 0 : i32
    return %c0_i32, %c0_i32_0 : i32, i32
  }
  func.func @transform_5(%arg0: i32, %arg1: i32) -> (i32, i32) {
    %c0_i32 = arith.constant 0 : i32
    %c0_i32_0 = arith.constant 0 : i32
    return %arg0, %c0_i32 : i32, i32
  }
}

</mosaic_0001>

<llo_original>
// kernel: _mlp_forward.1
$region0: #{_mlp_forward.1}
  #allocation0 [shape = 'u32[]', space=smem, size = 0x4, offset = 0x4, fixed_abs, tag = 'smem constant byte address 0x4 - core index']
  #allocation1 [shape = 'u32[144,128]{1,0:T(1,128)}', space=vmem, size = 0x12000, scoped, tag = 'internal scratch']
  #allocation2 [shape = 'f32[16,128]{1,0:T(8,128)}', space=vmem, size = 0x2000, scoped, tag = 'scratch operand']
  %s0 = inlined_call_operand.vmem [shape: bf16[16,1024], index: 0, kind: input, shape index: {}]
  %s1 = inlined_call_operand.hbm [shape: bf16[1024,128], index: 1, kind: input, shape index: {}]
  %s2 = inlined_call_operand.vmem [shape: f32[1,128], index: 2, kind: input, shape index: {}]
  %s3 = inlined_call_operand.vmem [shape: bf16[128,128], index: 3, kind: input, shape index: {}]
  %s4 = inlined_call_operand.vmem [shape: f32[1,128], index: 4, kind: input, shape index: {}]
  %s5 = inlined_call_operand.vmem [shape: f32[16,128], index: 5, kind: output, shape index: {}]
  %s6 = sld [smem:[#allocation0]]
  $region88: #{_mlp_forward.1} parent=0
    _
  %s8 = ssub.s32 1, %s6
  %s9 = scalar_select 0, %s8, %s6
  $region1: #{_mlp_forward.1} parent=0
    #allocation3 [shape = 'u8[32768]{0}', space=vmem, size = 0x8000, scoped, tag = 'input window, operand 0']
    #allocation4 [shape = 'u8[262144]{0}', space=vmem, size = 0x40000, scoped, tag = 'input window, operand 1']
    #allocation5 [shape = 's32[2]{0}', space=sflag, size = 0x8, scoped, tag = 'scoped memory for _mlp_forward.1']
    %10 = vsyncpa [#allocation5], 0
    %s11 = scalar_lea.sflag [#allocation5], 1
    %12 = vsyncpa %s11, 0
    loop: start=0, step=1, limit=4
    $region2: #{_mlp_forward.1} parent=1 // loop_pre_header
      _
    $region3: #{_mlp_forward.1} parent=1 // loop_header
      %s14 = sphi 0, %s18
      %p15 = scmp.ge.s32.totalorder %s14, 4
      %s21 = sphi 0, %s33
      %s22 = sphi 0, %s29
      %s23 = sphi 0, %s21
      %s24 = sphi 0, %s22
      %s25 = sphi 0, %s23
      %s26 = sphi 0, %s24
      %s38 = sphi 0, %s40
      %s41 = sphi 0, %s38
      %s42 = sphi 0, %s41
      %s58 = sphi 0, %s42
      %s64 = sphi 0, %s66
      %s67 = sphi 0, %s64
      %s68 = sphi 0, %s67
      %s84 = sphi 0, %s68
      %s88 = sphi 0, %s88
      %s90 = sphi 0, %s88
      %s91 = sphi 0, %s90
      %s105 = sphi 0, %s91
      %s109 = sphi 0, %s109
      %s111 = sphi 0, %s109
      %s112 = sphi 0, %s111
      %s126 = sphi 0, %s112
      %s130 = sphi 0, %s130
      %s132 = sphi 0, %s130
      %s133 = sphi 0, %s132
      %s147 = sphi 0, %s133
      %s153 = sphi 0, %s155
      %s156 = sphi 0, %s153
      %s157 = sphi 0, %s156
      %s173 = sphi 0, %s157
    $region4: #{_mlp_forward.1} parent=1 // loop_header_branch
      %17 = sbr.rel (%p15) target = $region8
    $region5: #{_mlp_forward.1} parent=1 // loop_body
      %s19 = ssub.s32 %s14, 1
      %s20 = ssub.s32 %s14, 2
      %s27 = sadd.s32 1, %s22
      %p28 = scmp.ge.s32.totalorder %s27, 2
      %s29 = scalar_select %p28, 0, %s27
      %s30 = sadd.s32 1, %s21
      %s31 = scalar_select %p28, %s30, %s21
      %p32 = scmp.ge.s32.totalorder %s31, 1
      %s33 = scalar_select %p32, 0, %s31
      %s34 = ssub.s32 %s21, %s33
      %s35 = ssub.s32 %s22, %s29
      %s36 = sor.u32 %s34, %s35
      %p37 = scmp.eq.s32.totalorder %s36, 0
      %s39 = sadd.s32 %s38, 1
      %s40 = scalar_select %p37, %s38, %s39
      %p43 = pneg %p37
      %p44 = scmp.eq.s32.totalorder %s14, 1
      %p45 = por %p43, %p44
      %p46 = scmp.ne.s32.totalorder %s38, %s41
      %p47 = scmp.eq.s32.totalorder %s14, 0
      %p48 = por %p46, %p47
      %p49 = scmp.ne.s32.totalorder %s38, %s41
      %p50 = scmp.eq.s32.totalorder %s19, 1
      %p51 = por %p49, %p50
      %p52 = scmp.ne.s32.totalorder %s41, %s42
      %p53 = scmp.eq.s32.totalorder %s19, 0
      %p54 = por %p52, %p53
      %p55 = scmp.ne.s32.totalorder %s41, %s42
      %p56 = scmp.eq.s32.totalorder %s20, 1
      %p57 = por %p55, %p56
      %p59 = scmp.ne.s32.totalorder %s42, %s58
      %p60 = scmp.eq.s32.totalorder %s20, 0
      %p61 = por %p59, %p60
      %s62 = ssub.s32 %s22, %s29
      %p63 = scmp.eq.s32.totalorder %s62, 0
      %s65 = sadd.s32 %s64, 1
      %s66 = scalar_select %p63, %s64, %s65
      %p69 = pneg %p63
      %p70 = scmp.eq.s32.totalorder %s14, 1
      %p71 = por %p69, %p70
      %p72 = scmp.ne.s32.totalorder %s64, %s67
      %p73 = scmp.eq.s32.totalorder %s14, 0
      %p74 = por %p72, %p73
      %p75 = scmp.ne.s32.totalorder %s64, %s67
      %p76 = scmp.eq.s32.totalorder %s19, 1
      %p77 = por %p75, %p76
      %p78 = scmp.ne.s32.totalorder %s67, %s68
      %p79 = scmp.eq.s32.totalorder %s19, 0
      %p80 = por %p78, %p79
      %p81 = scmp.ne.s32.totalorder %s67, %s68
      %p82 = scmp.eq.s32.totalorder %s20, 1
      %p83 = por %p81, %p82
      %p85 = scmp.ne.s32.totalorder %s68, %s84
      %p86 = scmp.eq.s32.totalorder %s20, 0
      %p87 = por %p85, %p86
      %s89 = sadd.s32 %s88, 1
      %p92 = scmp.eq.s32.totalorder %s14, 1
      %p93 = scmp.ne.s32.totalorder %s88, %s90
      %p94 = scmp.eq.s32.totalorder %s14, 0
      %p95 = por %p93, %p94
      %p96 = scmp.ne.s32.totalorder %s88, %s90
      %p97 = scmp.eq.s32.totalorder %s19, 1
      %p98 = por %p96, %p97
      %p99 = scmp.ne.s32.totalorder %s90, %s91
      %p100 = scmp.eq.s32.totalorder %s19, 0
      %p101 = por %p99, %p100
      %p102 = scmp.ne.s32.totalorder %s90, %s91
      %p103 = scmp.eq.s32.totalorder %s20, 1
      %p104 = por %p102, %p103
      %p106 = scmp.ne.s32.totalorder %s91, %s105
      %p107 = scmp.eq.s32.totalorder %s20, 0
      %p108 = por %p106, %p107
      %s110 = sadd.s32 %s109, 1
      %p113 = scmp.eq.s32.totalorder %s14, 1
      %p114 = scmp.ne.s32.totalorder %s109, %s111
      %p115 = scmp.eq.s32.totalorder %s14, 0
      %p116 = por %p114, %p115
      %p117 = scmp.ne.s32.totalorder %s109, %s111
      %p118 = scmp.eq.s32.totalorder %s19, 1
      %p119 = por %p117, %p118
      %p120 = scmp.ne.s32.totalorder %s111, %s112
      %p121 = scmp.eq.s32.totalorder %s19, 0
      %p122 = por %p120, %p121
      %p123 = scmp.ne.s32.totalorder %s111, %s112
      %p124 = scmp.eq.s32.totalorder %s20, 1
      %p125 = por %p123, %p124
      %p127 = scmp.ne.s32.totalorder %s112, %s126
      %p128 = scmp.eq.s32.totalorder %s20, 0
      %p129 = por %p127, %p128
      %s131 = sadd.s32 %s130, 1
      %p134 = scmp.eq.s32.totalorder %s14, 1
      %p135 = scmp.ne.s32.totalorder %s130, %s132
      %p136 = scmp.eq.s32.totalorder %s14, 0
      %p137 = por %p135, %p136
      %p138 = scmp.ne.s32.totalorder %s130, %s132
      %p139 = scmp.eq.s32.totalorder %s19, 1
      %p140 = por %p138, %p139
      %p141 = scmp.ne.s32.totalorder %s132, %s133
      %p142 = scmp.eq.s32.totalorder %s19, 0
      %p143 = por %p141, %p142
      %p144 = scmp.ne.s32.totalorder %s132, %s133
      %p145 = scmp.eq.s32.totalorder %s20, 1
      %p146 = por %p144, %p145
      %p148 = scmp.ne.s32.totalorder %s133, %s147
      %p149 = scmp.eq.s32.totalorder %s20, 0
      %p150 = por %p148, %p149
      %s151 = ssub.s32 %s21, %s33
      %p152 = scmp.eq.s32.totalorder %s151, 0
      %s154 = sadd.s32 %s153, 1
      %s155 = scalar_select %p152, %s153, %s154
      %p158 = pneg %p152
      %p159 = scmp.eq.s32.totalorder %s14, 1
      %p160 = por %p158, %p159
      %p161 = scmp.ne.s32.totalorder %s153, %s156
      %p162 = scmp.eq.s32.totalorder %s14, 0
      %p163 = por %p161, %p162
      %p164 = scmp.ne.s32.totalorder %s153, %s156
      %p165 = scmp.eq.s32.totalorder %s19, 1
      %p166 = por %p164, %p165
      %p167 = scmp.ne.s32.totalorder %s156, %s157
      %p168 = scmp.eq.s32.totalorder %s19, 0
      %p169 = por %p167, %p168
      %p170 = scmp.ne.s32.totalorder %s156, %s157
      %p171 = scmp.eq.s32.totalorder %s20, 1
      %p172 = por %p170, %p171
      %p174 = scmp.ne.s32.totalorder %s157, %s173
      %p175 = scmp.eq.s32.totalorder %s20, 0
      %p176 = por %p174, %p175
      %p177 = scmp.le.s32.totalorder 1, %s14
      %p178 = scmp.lt.s32.totalorder %s14, 3
      %p179 = pnand %p177, %p178
      %p180 = pneg %p179
      // Predicated region
      $region9: #{_mlp_forward.1} parent=5 // pred_check
        _
      $region10: #{_mlp_forward.1} parent=5 // pred_check_branch
        %182 = sbr.rel (%p179) target = $region12
      $region11: #{_mlp_forward.1} parent=5 // pred_region
        %s183 = ssub.s32 %s14, 1
        // Predicated region
        $region13: #{_mlp_forward.1} parent=11 // pred_check
          %p184 = pneg %p101
        $region14: #{_mlp_forward.1} parent=11 // pred_check_branch
          %186 = sbr.rel (%p184) target = $region16
        $region15: #{_mlp_forward.1} parent=11 // pred_region
          _
        $region16: #{_mlp_forward.1} parent=11 // pred_fallthru
          _
        // Predicated region
        $region17: #{_mlp_forward.1} parent=11 // pred_check
          %p187 = pneg %p122
        $region18: #{_mlp_forward.1} parent=11 // pred_check_branch
          %189 = sbr.rel (%p187) target = $region20
        $region19: #{_mlp_forward.1} parent=11 // pred_region
          _
        $region20: #{_mlp_forward.1} parent=11 // pred_fallthru
          _
        // Predicated region
        $region21: #{_mlp_forward.1} parent=11 // pred_check
          %p190 = pneg %p143
        $region22: #{_mlp_forward.1} parent=11 // pred_check_branch
          %192 = sbr.rel (%p190) target = $region24
        $region23: #{_mlp_forward.1} parent=11 // pred_region
          _
        $region24: #{_mlp_forward.1} parent=11 // pred_fallthru
          _
      $region12: #{_mlp_forward.1} parent=5 // pred_fallthru
        _
      %p193 = scmp.lt.s32.totalorder %s14, 2
      // Predicated region
      $region25: #{_mlp_forward.1} parent=5 // pred_check
        %p194 = pneg %p193
      $region26: #{_mlp_forward.1} parent=5 // pred_check_branch
        %196 = sbr.rel (%p194) target = $region28
      $region27: #{_mlp_forward.1} parent=5 // pred_region
        // Predicated region
        $region29: #{_mlp_forward.1} parent=27 // pred_check
          %p197 = pneg %p48
        $region30: #{_mlp_forward.1} parent=27 // pred_check_branch
          %199 = sbr.rel (%p197) target = $region32
        $region31: #{_mlp_forward.1} parent=27 // pred_region
          %s200 = sand.u32 %s38, 1
          %s201 = sand.u32 %s38, 1
          %s202 = smul.addr %s201, 32
          %s203 = scalar_lea.vmem [#allocation3], %s202
          %s204 = smul.u32 2, %s21
          %s205 = smul.u32 4, %s22
          %s206 = smul.addr %s204, 8
          %s207 = sadd.s32 %s205, %s206
          %s208 = smul.addr %s207, 4
          %s209 = scalar_lea.vmem %s0, %s208
          // Predicated region
          $region33: #{_mlp_forward.1} parent=31 // pred_check
            _
          $region34: #{_mlp_forward.1} parent=31 // pred_check_branch
            %211 = sbr.rel (0) target = $region36
          $region35: #{_mlp_forward.1} parent=31 // pred_region
            // Predicated region
            $region37: #{_mlp_forward.1} parent=35 // pred_check
              _
            $region38: #{_mlp_forward.1} parent=35 // pred_check_branch
              %213 = sbr.rel (0) target = $region40
            $region39: #{_mlp_forward.1} parent=35 // pred_region
              loop: start=0, step=1, limit=1
              $region41: #{_mlp_forward.1} parent=39 // loop_pre_header
                _
              $region42: #{_mlp_forward.1} parent=39 // loop_header
                %s215 = sphi 0, %s219
                %p216 = scmp.ge.s32.totalorder %s215, 1
                %s220 = sphi %s209, %s209
                %s221 = sphi %s203, %s203
              $region43: #{_mlp_forward.1} parent=39 // loop_header_branch
                %218 = sbr.rel (%p216) target = $region47
              $region44: #{_mlp_forward.1} parent=39 // loop_body
                %v222 = vld [vmem:[%s220] sm:$0xff]
                %223 = vst [vmem:[%s221] sm:$0xff] %v222
                %v224 = vld [vmem:[%s220 + $0x8] sm:$0xff]
                %225 = vst [vmem:[%s221 + $0x8] sm:$0xff] %v224
                %v226 = vld [vmem:[%s220 + $0x20] sm:$0xff]
                %227 = vst [vmem:[%s221 + $0x10] sm:$0xff] %v226
                %v228 = vld [vmem:[%s220 + $0x28] sm:$0xff]
                %229 = vst [vmem:[%s221 + $0x18] sm:$0xff] %v228
              $region45: #{_mlp_forward.1} parent=39 // loop_footer
                %s219 = sadd.s32 1, %s215
              $region46: #{_mlp_forward.1} parent=39 // loop_footer_branch
                %214 = sbr.rel target = $region42
              $region47: #{_mlp_forward.1} parent=39 // loop_exit
                _
            $region40: #{_mlp_forward.1} parent=35 // pred_fallthru
              _
            // Predicated region
            $region48: #{_mlp_forward.1} parent=35 // pred_check
              _
            $region49: #{_mlp_forward.1} parent=35 // pred_check_branch
              %231 = sbr.rel target = $region51
            $region50: #{_mlp_forward.1} parent=35 // pred_region
              _
            $region51: #{_mlp_forward.1} parent=35 // pred_fallthru
              _
          $region36: #{_mlp_forward.1} parent=31 // pred_fallthru
            _
          %232 = vnop
        $region32: #{_mlp_forward.1} parent=27 // pred_fallthru
          _
        // Predicated region
        $region52: #{_mlp_forward.1} parent=27 // pred_check
          %p233 = pneg %p74
        $region53: #{_mlp_forward.1} parent=27 // pred_check_branch
          %235 = sbr.rel (%p233) target = $region55
        $region54: #{_mlp_forward.1} parent=27 // pred_region
          %s236 = sand.u32 %s64, 1
          %s237 = scalar_lea.sflag [#allocation5], %s236
          %s238 = sand.u32 %s64, 1
          %s239 = smul.addr %s238, 256
          %s240 = scalar_lea.vmem [#allocation4], %s239
          %s241 = smul.u32 64, %s22
          %s243 = ssub.s32 4096, 4096
          %244 = vsyncadd %s237, %s243
          %s245 = smul.addr %s241, 64
          %s246 = scalar_lea.hbm %s1, %s245
          %s247 = sshll.u32 %s240, 4
          %s248 = int_to_ptr.vmem [resolvable:$true] %s247
          %253 = dma.hbm_to_vmem [thread:$0]  %s246, 4096, %s248, %s237, 64, 64, 4
        $region55: #{_mlp_forward.1} parent=27 // pred_fallthru
          _
      $region28: #{_mlp_forward.1} parent=5 // pred_fallthru
        _
      %p254 = scmp.le.s32.totalorder 1, %s14
      %p255 = scmp.lt.s32.totalorder %s14, 3
      %p256 = pnand %p254, %p255
      %p257 = pneg %p256
      // Predicated region
      $region56: #{_mlp_forward.1} parent=5 // pred_check
        _
      $region57: #{_mlp_forward.1} parent=5 // pred_check_branch
        %259 = sbr.rel (%p256) target = $region59
      $region58: #{_mlp_forward.1} parent=5 // pred_region
        %s260 = ssub.s32 %s14, 1
        %s261 = sand.u32 %s41, 1
        %s262 = sand.u32 %s41, 1
        %s263 = smul.addr %s262, 32
        %s264 = scalar_lea.vmem [#allocation3], %s263
        // Predicated region
        $region60: #{_mlp_forward.1} parent=58 // pred_check
          %p265 = pneg %p54
        $region61: #{_mlp_forward.1} parent=58 // pred_check_branch
          %267 = sbr.rel (%p265) target = $region63
        $region62: #{_mlp_forward.1} parent=58 // pred_region
          _
        $region63: #{_mlp_forward.1} parent=58 // pred_fallthru
          _
        %s268 = sand.u32 %s67, 1
        %s269 = scalar_lea.sflag [#allocation5], %s268
        %s270 = sand.u32 %s67, 1
        %s271 = smul.addr %s270, 256
        %s272 = scalar_lea.vmem [#allocation4], %s271
        // Predicated region
        $region64: #{_mlp_forward.1} parent=58 // pred_check
          %p273 = pneg %p80
        $region65: #{_mlp_forward.1} parent=58 // pred_check_branch
          %275 = sbr.rel (%p273) target = $region67
        $region66: #{_mlp_forward.1} parent=58 // pred_region
          %276 = dma.done %s269, 4096
        $region67: #{_mlp_forward.1} parent=58 // pred_fallthru
          _
        %s277 = sand.u32 %s41, 1
        %s278 = sand.u32 %s41, 1
        %s279 = smul.addr %s278, 32
        %s280 = scalar_lea.vmem [#allocation3], %s279
        %p281 = pneg %p54
        %p282 = pneg %p51
        %s283 = sand.u32 %s67, 1
        %s284 = scalar_lea.sflag [#allocation5], %s283
        %s285 = sand.u32 %s67, 1
        %s286 = smul.addr %s285, 256
        %s287 = scalar_lea.vmem [#allocation4], %s286
        %p288 = pneg %p80
        %p289 = pneg %p77
        %p290 = pneg %p101
        %p291 = pneg %p98
        %p292 = pneg %p122
        %p293 = pneg %p119
        %p294 = pneg %p143
        %p295 = pneg %p140
        %p296 = pneg %p169
        %p297 = pneg %p166
        %s298 = smul.u32 2, %s23
        %p299 = scmp.lt.s32.totalorder %s298, 1
        %s300 = scalar_select %p299, %s298, 1
        %s301 = smul.addr %s300, 8
        %s302 = scalar_lea.vmem %s5, %s301
        %s303 = smul.u32 2, %s23
        %s304 = smul.u32 4, %s24
        %s305 = smul.u32 64, %s24
        %s306 = smul.u32 2, %s23
        %p307 = scmp.lt.s32.totalorder %s306, 1
        %s308 = scalar_select %p307, %s306, 1
        %s309 = smul.addr %s308, 8
        %s310 = scalar_lea.vmem %s5, %s309
        %s311 = smul.u32 2, %s23
        %p313 = scmp.eq.s32.totalorder %s24, 0
        // Predicated region
        $region68: #{_mlp_forward.1} parent=58 // pred_check
          %p314 = pneg %p313
        $region69: #{_mlp_forward.1} parent=58 // pred_check_branch
          %316 = sbr.rel (%p314) target = $region71
        $region70: #{_mlp_forward.1} parent=58 // pred_region
          %317 = vst [vmem:[#allocation2] sm:$0xff] 0.0
          %318 = vst [vmem:[#allocation2 + $0x8] sm:$0xff] 0.0
        $region71: #{_mlp_forward.1} parent=58 // pred_fallthru
          _
        %v319 = vld [vmem:[#allocation2] sm:$0xff]
        %v320 = vld [vmem:[#allocation2 + $0x8] sm:$0xff]
        %v321 = vld [vmem:[%s264] sm:$0xff]
        %v322 = vld [vmem:[%s264 + $0x8] sm:$0xff]
        %v323 = vld [vmem:[%s264 + $0x10] sm:$0xff]
        %v324 = vld [vmem:[%s264 + $0x18] sm:$0xff]
        %v325 = vld [vmem:[%s272] sm:$0xf]
        %v326 = vld [vmem:[%s272 + $0x4] sm:$0xf]
        %v327 = vld [vmem:[%s272 + $0x8] sm:$0xf]
        %v328 = vld [vmem:[%s272 + $0xc] sm:$0xf]
        %v329 = vld [vmem:[%s272 + $0x10] sm:$0xf]
        %v330 = vld [vmem:[%s272 + $0x14] sm:$0xf]
        %v331 = vld [vmem:[%s272 + $0x18] sm:$0xf]
        %v332 = vld [vmem:[%s272 + $0x1c] sm:$0xf]
        %v333 = vld [vmem:[%s272 + $0x20] sm:$0xf]
        %v334 = vld [vmem:[%s272 + $0x24] sm:$0xf]
        %v335 = vld [vmem:[%s272 + $0x28] sm:$0xf]
        %v336 = vld [vmem:[%s272 + $0x2c] sm:$0xf]
        %v337 = vld [vmem:[%s272 + $0x30] sm:$0xf]
        %v338 = vld [vmem:[%s272 + $0x34] sm:$0xf]
        %v339 = vld [vmem:[%s272 + $0x38] sm:$0xf]
        %v340 = vld [vmem:[%s272 + $0x3c] sm:$0xf]
        %v341 = vld [vmem:[%s272 + $0x40] sm:$0xf]
        %v342 = vld [vmem:[%s272 + $0x44] sm:$0xf]
        %v343 = vld [vmem:[%s272 + $0x48] sm:$0xf]
        %v344 = vld [vmem:[%s272 + $0x4c] sm:$0xf]
        %v345 = vld [vmem:[%s272 + $0x50] sm:$0xf]
        %v346 = vld [vmem:[%s272 + $0x54] sm:$0xf]
        %v347 = vld [vmem:[%s272 + $0x58] sm:$0xf]
        %v348 = vld [vmem:[%s272 + $0x5c] sm:$0xf]
        %v349 = vld [vmem:[%s272 + $0x60] sm:$0xf]
        %v350 = vld [vmem:[%s272 + $0x64] sm:$0xf]
        %v351 = vld [vmem:[%s272 + $0x68] sm:$0xf]
        %v352 = vld [vmem:[%s272 + $0x6c] sm:$0xf]
        %v353 = vld [vmem:[%s272 + $0x70] sm:$0xf]
        %v354 = vld [vmem:[%s272 + $0x74] sm:$0xf]
        %v355 = vld [vmem:[%s272 + $0x78] sm:$0xf]
        %v356 = vld [vmem:[%s272 + $0x7c] sm:$0xf]
        %v357 = vld [vmem:[%s272 + $0x80] sm:$0xf]
        %v358 = vld [vmem:[%s272 + $0x84] sm:$0xf]
        %v359 = vld [vmem:[%s272 + $0x88] sm:$0xf]
        %v360 = vld [vmem:[%s272 + $0x8c] sm:$0xf]
        %v361 = vld [vmem:[%s272 + $0x90] sm:$0xf]
        %v362 = vld [vmem:[%s272 + $0x94] sm:$0xf]
        %v363 = vld [vmem:[%s272 + $0x98] sm:$0xf]
        %v364 = vld [vmem:[%s272 + $0x9c] sm:$0xf]
        %v365 = vld [vmem:[%s272 + $0xa0] sm:$0xf]
        %v366 = vld [vmem:[%s272 + $0xa4] sm:$0xf]
        %v367 = vld [vmem:[%s272 + $0xa8] sm:$0xf]
        %v368 = vld [vmem:[%s272 + $0xac] sm:$0xf]
        %v369 = vld [vmem:[%s272 + $0xb0] sm:$0xf]
        %v370 = vld [vmem:[%s272 + $0xb4] sm:$0xf]
        %v371 = vld [vmem:[%s272 + $0xb8] sm:$0xf]
        %v372 = vld [vmem:[%s272 + $0xbc] sm:$0xf]
        %v373 = vld [vmem:[%s272 + $0xc0] sm:$0xf]
        %v374 = vld [vmem:[%s272 + $0xc4] sm:$0xf]
        %v375 = vld [vmem:[%s272 + $0xc8] sm:$0xf]
        %v376 = vld [vmem:[%s272 + $0xcc] sm:$0xf]
        %v377 = vld [vmem:[%s272 + $0xd0] sm:$0xf]
        %v378 = vld [vmem:[%s272 + $0xd4] sm:$0xf]
        %v379 = vld [vmem:[%s272 + $0xd8] sm:$0xf]
        %v380 = vld [vmem:[%s272 + $0xdc] sm:$0xf]
        %v381 = vld [vmem:[%s272 + $0xe0] sm:$0xf]
        %v382 = vld [vmem:[%s272 + $0xe4] sm:$0xf]
        %v383 = vld [vmem:[%s272 + $0xe8] sm:$0xf]
        %v384 = vld [vmem:[%s272 + $0xec] sm:$0xf]
        %v385 = vld [vmem:[%s272 + $0xf0] sm:$0xf]
        %v386 = vld [vmem:[%s272 + $0xf4] sm:$0xf]
        %v387 = vld [vmem:[%s272 + $0xf8] sm:$0xf]
        %v388 = vld [vmem:[%s272 + $0xfc] sm:$0xf]
        %v393 = vunpack.c.l.b16 %v321
        %v394 = vunpack.c.h.b16 %v321
        %v395 = vunpack.c.l.b16 %v322
        %v396 = vunpack.c.h.b16 %v322
        %v397 = vunpack.c.l.b16 %v323
        %v398 = vunpack.c.h.b16 %v323
        %v399 = vunpack.c.l.b16 %v324
        %v400 = vunpack.c.h.b16 %v324
        %v401 = vpack.c.b16 %v397, %v393
        %v402 = vpack.c.b16 %v398, %v394
        %v403 = vpack.c.b16 %v399, %v395
        %v404 = vpack.c.b16 %v400, %v396
        %v473 = vunpack.c.l.b16 %v325
        %v474 = vunpack.c.l.b16 %v326
        %v475 = vunpack.c.l.b16 %v327
        %v476 = vunpack.c.l.b16 %v328
        %v477 = vunpack.c.l.b16 %v329
        %v478 = vunpack.c.l.b16 %v330
        %v479 = vunpack.c.l.b16 %v331
        %v480 = vunpack.c.l.b16 %v332
        %v481 = vunpack.c.l.b16 %v333
        %v482 = vunpack.c.l.b16 %v334
        %v483 = vunpack.c.l.b16 %v335
        %v484 = vunpack.c.l.b16 %v336
        %v485 = vunpack.c.l.b16 %v337
        %v486 = vunpack.c.l.b16 %v338
        %v487 = vunpack.c.l.b16 %v339
        %v488 = vunpack.c.l.b16 %v340
        %v489 = vunpack.c.l.b16 %v341
        %v490 = vunpack.c.l.b16 %v342
        %v491 = vunpack.c.l.b16 %v343
        %v492 = vunpack.c.l.b16 %v344
        %v493 = vunpack.c.l.b16 %v345
        %v494 = vunpack.c.l.b16 %v346
        %v495 = vunpack.c.l.b16 %v347
        %v496 = vunpack.c.l.b16 %v348
        %v497 = vunpack.c.l.b16 %v349
        %v498 = vunpack.c.l.b16 %v350
        %v499 = vunpack.c.l.b16 %v351
        %v500 = vunpack.c.l.b16 %v352
        %v501 = vunpack.c.l.b16 %v353
        %v502 = vunpack.c.l.b16 %v354
        %v503 = vunpack.c.l.b16 %v355
        %v504 = vunpack.c.l.b16 %v356
        %v505 = vunpack.c.l.b16 %v357
        %v506 = vunpack.c.l.b16 %v358
        %v507 = vunpack.c.l.b16 %v359
        %v508 = vunpack.c.l.b16 %v360
        %v509 = vunpack.c.l.b16 %v361
        %v510 = vunpack.c.l.b16 %v362
        %v511 = vunpack.c.l.b16 %v363
        %v512 = vunpack.c.l.b16 %v364
        %v513 = vunpack.c.l.b16 %v365
        %v514 = vunpack.c.l.b16 %v366
        %v515 = vunpack.c.l.b16 %v367
        %v516 = vunpack.c.l.b16 %v368
        %v517 = vunpack.c.l.b16 %v369
        %v518 = vunpack.c.l.b16 %v370
        %v519 = vunpack.c.l.b16 %v371
        %v520 = vunpack.c.l.b16 %v372
        %v521 = vunpack.c.l.b16 %v373
        %v522 = vunpack.c.l.b16 %v374
        %v523 = vunpack.c.l.b16 %v375
        %v524 = vunpack.c.l.b16 %v376
        %v525 = vunpack.c.l.b16 %v377
        %v526 = vunpack.c.l.b16 %v378
        %v527 = vunpack.c.l.b16 %v379
        %v528 = vunpack.c.l.b16 %v380
        %v529 = vunpack.c.l.b16 %v381
        %v530 = vunpack.c.l.b16 %v382
        %v531 = vunpack.c.l.b16 %v383
        %v532 = vunpack.c.l.b16 %v384
        %v533 = vunpack.c.l.b16 %v385
        %v534 = vunpack.c.l.b16 %v386
        %v535 = vunpack.c.l.b16 %v387
        %v536 = vunpack.c.l.b16 %v388
        %v537 = vpack.c.b16 %v474, %v473
        %v538 = vpack.c.b16 %v476, %v475
        %v539 = vpack.c.b16 %v478, %v477
        %v540 = vpack.c.b16 %v480, %v479
        %v541 = vpack.c.b16 %v482, %v481
        %v542 = vpack.c.b16 %v484, %v483
        %v543 = vpack.c.b16 %v486, %v485
        %v544 = vpack.c.b16 %v488, %v487
        %v545 = vpack.c.b16 %v490, %v489
        %v546 = vpack.c.b16 %v492, %v491
        %v547 = vpack.c.b16 %v494, %v493
        %v548 = vpack.c.b16 %v496, %v495
        %v549 = vpack.c.b16 %v498, %v497
        %v550 = vpack.c.b16 %v500, %v499
        %v551 = vpack.c.b16 %v502, %v501
        %v552 = vpack.c.b16 %v504, %v503
        %v553 = vpack.c.b16 %v506, %v505
        %v554 = vpack.c.b16 %v508, %v507
        %v555 = vpack.c.b16 %v510, %v509
        %v556 = vpack.c.b16 %v512, %v511
        %v557 = vpack.c.b16 %v514, %v513
        %v558 = vpack.c.b16 %v516, %v515
        %v559 = vpack.c.b16 %v518, %v517
        %v560 = vpack.c.b16 %v520, %v519
        %v561 = vpack.c.b16 %v522, %v521
        %v562 = vpack.c.b16 %v524, %v523
        %v563 = vpack.c.b16 %v526, %v525
        %v564 = vpack.c.b16 %v528, %v527
        %v565 = vpack.c.b16 %v530, %v529
        %v566 = vpack.c.b16 %v532, %v531
        %v567 = vpack.c.b16 %v534, %v533
        %v568 = vpack.c.b16 %v536, %v535
        %601 = vmatprep.subr.bf16.mxu0 0
        %602 = vmatpush1.bf16.msra.mxu0 %v544
        %603 = vmatprep.subr.bf16.mxu0 0
        %604 = vmatpush1.bf16.msra.mxu0 %v543
        %605 = vmatprep.subr.bf16.mxu0 0
        %606 = vmatpush1.bf16.msra.mxu0 %v542
        %607 = vmatprep.subr.bf16.mxu0 0
        %608 = vmatpush1.bf16.msra.mxu0 %v541
        %609 = vmatprep.subr.bf16.mxu0 0
        %610 = vmatpush1.bf16.msra.mxu0 %v540
        %611 = vmatprep.subr.bf16.mxu0 0
        %612 = vmatpush1.bf16.msra.mxu0 %v539
        %613 = vmatprep.subr.bf16.mxu0 0
        %614 = vmatpush1.bf16.msra.mxu0 %v538
        %615 = vmatprep.subr.bf16.mxu0 0
        %616 = vmatpush1.bf16.msra.mxu0 %v537
        %617 = vmatprep.subr.bf16.mxu0 0
        %618 = vmatpush2.bf16.msra.mxu0 %v552
        %619 = vmatprep.subr.bf16.mxu0 0
        %620 = vmatpush2.bf16.msra.mxu0 %v551
        %621 = vmatprep.subr.bf16.mxu0 0
        %622 = vmatpush2.bf16.msra.mxu0 %v550
        %623 = vmatprep.subr.bf16.mxu0 0
        %624 = vmatpush2.bf16.msra.mxu0 %v549
        %625 = vmatprep.subr.bf16.mxu0 0
        %626 = vmatpush2.bf16.msra.mxu0 %v548
        %627 = vmatprep.subr.bf16.mxu0 0
        %628 = vmatpush2.bf16.msra.mxu0 %v547
        %629 = vmatprep.subr.bf16.mxu0 0
        %630 = vmatpush2.bf16.msra.mxu0 %v546
        %631 = vmatprep.subr.bf16.mxu0 0
        %632 = vmatpush2.bf16.msra.mxu0 %v545
        %633 = vmatprep.mubr.bf16.mxu0 %v402
        %634 = vmatmul.mubr.bf16.gmra.mxu0 %v401
        %v635 = vpop.f32.mrf.mxu0
        %v636 = vadd.f32 0.0, %v635
        %v637 = vpop.f32.mrf.mxu0
        %v638 = vpop.f32.mrf.mxu0
        %v639 = vadd.f32 0.0, %v638
        %v640 = vpop.f32.mrf.mxu0
        %641 = vdwg.mxu0
        %642 = vmatprep.subr.bf16.mxu0 0
        %643 = vmatpush1.bf16.msra.mxu0 %v560
        %644 = vmatprep.subr.bf16.mxu0 0
        %645 = vmatpush1.bf16.msra.mxu0 %v559
        %646 = vmatprep.subr.bf16.mxu0 0
        %647 = vmatpush1.bf16.msra.mxu0 %v558
        %648 = vmatprep.subr.bf16.mxu0 0
        %649 = vmatpush1.bf16.msra.mxu0 %v557
        %650 = vmatprep.subr.bf16.mxu0 0
        %651 = vmatpush1.bf16.msra.mxu0 %v556
        %652 = vmatprep.subr.bf16.mxu0 0
        %653 = vmatpush1.bf16.msra.mxu0 %v555
        %654 = vmatprep.subr.bf16.mxu0 0
        %655 = vmatpush1.bf16.msra.mxu0 %v554
        %656 = vmatprep.subr.bf16.mxu0 0
        %657 = vmatpush1.bf16.msra.mxu0 %v553
        %658 = vmatprep.subr.bf16.mxu0 0
        %659 = vmatpush2.bf16.msra.mxu0 %v568
        %660 = vmatprep.subr.bf16.mxu0 0
        %661 = vmatpush2.bf16.msra.mxu0 %v567
        %662 = vmatprep.subr.bf16.mxu0 0
        %663 = vmatpush2.bf16.msra.mxu0 %v566
        %664 = vmatprep.subr.bf16.mxu0 0
        %665 = vmatpush2.bf16.msra.mxu0 %v565
        %666 = vmatprep.subr.bf16.mxu0 0
        %667 = vmatpush2.bf16.msra.mxu0 %v564
        %668 = vmatprep.subr.bf16.mxu0 0
        %669 = vmatpush2.bf16.msra.mxu0 %v563
        %670 = vmatprep.subr.bf16.mxu0 0
        %671 = vmatpush2.bf16.msra.mxu0 %v562
        %672 = vmatprep.subr.bf16.mxu0 0
        %673 = vmatpush2.bf16.msra.mxu0 %v561
        %674 = vmatprep.mubr.bf16.mxu0 %v404
        %675 = vmatmul.mubr.bf16.gmra.mxu0 %v403
        %v676 = vpop.f32.mrf.mxu0
        %v677 = vadd.f32 %v636, %v676
        %v678 = vpop.f32.mrf.mxu0
        %v679 = vpop.f32.mrf.mxu0
        %v680 = vadd.f32 %v639, %v679
        %v681 = vpop.f32.mrf.mxu0
        %682 = vdwg.mxu0
        %v683 = vadd.f32 %v319, %v677
        %v684 = vadd.f32 %v320, %v680
        %685 = vst [vmem:[#allocation2] sm:$0xff] %v683
        %686 = vst [vmem:[#allocation2 + $0x8] sm:$0xff] %v684
        %p687 = scmp.eq.s32.totalorder %s24, 1
        // Predicated region
        $region72: #{_mlp_forward.1} parent=58 // pred_check
          %p688 = pneg %p687
        $region73: #{_mlp_forward.1} parent=58 // pred_check_branch
          %690 = sbr.rel (%p688) target = $region75
        $region74: #{_mlp_forward.1} parent=58 // pred_region
          %v691 = vld [vmem:[#allocation2] sm:$0xff]
          %v692 = vld [vmem:[#allocation2 + $0x8] sm:$0xff]
          %v693 = vld [vmem:[%s2] sm:$0x1]
          %v695 = vlaneseq
          %v696 = vshrl.u32 %v695, 7
          %v697 = vsub.s32 0, %v696
          %v698 = vrot.slane %v693, %v697
          %v700 = vadd.f32 %v691, %v698
          %v701 = vadd.f32 %v692, %v698
          %v702 = vmax.f32 %v700, 0.0
          %v703 = vmax.f32 %v701, 0.0
          %v704 = vpack.c.bf16 %v703, %v702
          %v705 = vld [vmem:[%s3] sm:$0xf]
          %v706 = vld [vmem:[%s3 + $0x4] sm:$0xf]
          %v707 = vld [vmem:[%s3 + $0x8] sm:$0xf]
          %v708 = vld [vmem:[%s3 + $0xc] sm:$0xf]
          %v709 = vld [vmem:[%s3 + $0x10] sm:$0xf]
          %v710 = vld [vmem:[%s3 + $0x14] sm:$0xf]
          %v711 = vld [vmem:[%s3 + $0x18] sm:$0xf]
          %v712 = vld [vmem:[%s3 + $0x1c] sm:$0xf]
          %v713 = vld [vmem:[%s3 + $0x20] sm:$0xf]
          %v714 = vld [vmem:[%s3 + $0x24] sm:$0xf]
          %v715 = vld [vmem:[%s3 + $0x28] sm:$0xf]
          %v716 = vld [vmem:[%s3 + $0x2c] sm:$0xf]
          %v717 = vld [vmem:[%s3 + $0x30] sm:$0xf]
          %v718 = vld [vmem:[%s3 + $0x34] sm:$0xf]
          %v719 = vld [vmem:[%s3 + $0x38] sm:$0xf]
          %v720 = vld [vmem:[%s3 + $0x3c] sm:$0xf]
          %v721 = vld [vmem:[%s4] sm:$0x1]
          %v723 = vlaneseq
          %v724 = vshrl.u32 %v723, 7
          %v725 = vsub.s32 0, %v724
          %v726 = vrot.slane %v721, %v725
          %v744 = vunpack.c.l.b16 %v705
          %v745 = vunpack.c.l.b16 %v706
          %v746 = vunpack.c.l.b16 %v707
          %v747 = vunpack.c.l.b16 %v708
          %v748 = vunpack.c.l.b16 %v709
          %v749 = vunpack.c.l.b16 %v710
          %v750 = vunpack.c.l.b16 %v711
          %v751 = vunpack.c.l.b16 %v712
          %v752 = vunpack.c.l.b16 %v713
          %v753 = vunpack.c.l.b16 %v714
          %v754 = vunpack.c.l.b16 %v715
          %v755 = vunpack.c.l.b16 %v716
          %v756 = vunpack.c.l.b16 %v717
          %v757 = vunpack.c.l.b16 %v718
          %v758 = vunpack.c.l.b16 %v719
          %v759 = vunpack.c.l.b16 %v720
          %v760 = vpack.c.b16 %v745, %v744
          %v761 = vpack.c.b16 %v747, %v746
          %v762 = vpack.c.b16 %v749, %v748
          %v763 = vpack.c.b16 %v751, %v750
          %v764 = vpack.c.b16 %v753, %v752
          %v765 = vpack.c.b16 %v755, %v754
          %v766 = vpack.c.b16 %v757, %v756
          %v767 = vpack.c.b16 %v759, %v758
          %776 = vmatprep.subr.bf16.mxu0 0
          %777 = vmatpush1.bf16.msra.mxu0 %v767
          %778 = vmatprep.subr.bf16.mxu0 0
          %779 = vmatpush1.bf16.msra.mxu0 %v766
          %780 = vmatprep.subr.bf16.mxu0 0
          %781 = vmatpush1.bf16.msra.mxu0 %v765
          %782 = vmatprep.subr.bf16.mxu0 0
          %783 = vmatpush1.bf16.msra.mxu0 %v764
          %784 = vmatprep.subr.bf16.mxu0 0
          %785 = vmatpush1.bf16.msra.mxu0 %v763
          %786 = vmatprep.subr.bf16.mxu0 0
          %787 = vmatpush1.bf16.msra.mxu0 %v762
          %788 = vmatprep.subr.bf16.mxu0 0
          %789 = vmatpush1.bf16.msra.mxu0 %v761
          %790 = vmatprep.subr.bf16.mxu0 0
          %791 = vmatpush1.bf16.msra.mxu0 %v760
          %792 = vmatprep.subr.bf16.mxu0 0
          %793 = vmatpush2.bf16.msra.mxu0 0
          %794 = vmatprep.subr.bf16.mxu0 0
          %795 = vmatpush2.bf16.msra.mxu0 0
          %796 = vmatprep.subr.bf16.mxu0 0
          %797 = vmatpush2.bf16.msra.mxu0 0
          %798 = vmatprep.subr.bf16.mxu0 0
          %799 = vmatpush2.bf16.msra.mxu0 0
          %800 = vmatprep.subr.bf16.mxu0 0
          %801 = vmatpush2.bf16.msra.mxu0 0
          %802 = vmatprep.subr.bf16.mxu0 0
          %803 = vmatpush2.bf16.msra.mxu0 0
          %804 = vmatprep.subr.bf16.mxu0 0
          %805 = vmatpush2.bf16.msra.mxu0 0
          %806 = vmatprep.subr.bf16.mxu0 0
          %807 = vmatpush2.bf16.msra.mxu0 0
          %808 = vmatprep.mubr.bf16.mxu0 0
          %809 = vmatmul.mubr.bf16.gmra.mxu0 %v704
          %v810 = vpop.f32.mrf.mxu0
          %v811 = vadd.f32 %v726, %v810
          %v812 = vpop.f32.mrf.mxu0
          %v813 = vpop.f32.mrf.mxu0
          %v814 = vadd.f32 %v726, %v813
          %v815 = vpop.f32.mrf.mxu0
          %816 = vdwg.mxu0
          %817 = vst [vmem:[%s310] sm:$0xff] %v811
          %818 = vst [vmem:[%s310 + $0x8] sm:$0xff] %v814
        $region75: #{_mlp_forward.1} parent=58 // pred_fallthru
          _
        %s819 = smul.u32 2, %s23
        %p820 = scmp.lt.s32.totalorder %s819, 1
        %s821 = scalar_select %p820, %s819, 1
        %s822 = smul.addr %s821, 8
        %s823 = scalar_lea.vmem %s5, %s822
        // Predicated region
        $region76: #{_mlp_forward.1} parent=58 // pred_check
          %p824 = pneg %p166
        $region77: #{_mlp_forward.1} parent=58 // pred_check_branch
          %826 = sbr.rel (%p824) target = $region79
        $region78: #{_mlp_forward.1} parent=58 // pred_region
          %s827 = smul.u32 2, %s23
        $region79: #{_mlp_forward.1} parent=58 // pred_fallthru
          _
        // Predicated region
        $region80: #{_mlp_forward.1} parent=58 // pred_check
          %p828 = pneg %p166
        $region81: #{_mlp_forward.1} parent=58 // pred_check_branch
          %830 = sbr.rel (%p828) target = $region83
        $region82: #{_mlp_forward.1} parent=58 // pred_region
          %s831 = smul.u32 2, %s23
          %p832 = scmp.lt.s32.totalorder %s831, 1
          %s833 = scalar_select %p832, %s831, 1
          %s834 = smul.addr %s833, 8
          %s835 = scalar_lea.vmem %s5, %s834
        $region83: #{_mlp_forward.1} parent=58 // pred_fallthru
          _
      $region59: #{_mlp_forward.1} parent=5 // pred_fallthru
        _
      %p836 = scmp.le.s32.totalorder 2, %s14
      // Predicated region
      $region84: #{_mlp_forward.1} parent=5 // pred_check
        %p837 = pneg %p836
      $region85: #{_mlp_forward.1} parent=5 // pred_check_branch
        %839 = sbr.rel (%p837) target = $region87
      $region86: #{_mlp_forward.1} parent=5 // pred_region
        %s840 = ssub.s32 %s14, 2
      $region87: #{_mlp_forward.1} parent=5 // pred_fallthru
        _
    $region6: #{_mlp_forward.1} parent=1 // loop_footer
      %s18 = sadd.s32 1, %s14
    $region7: #{_mlp_forward.1} parent=1 // loop_footer_branch
      %13 = sbr.rel target = $region3
    $region8: #{_mlp_forward.1} parent=1 // loop_exit
      _
    %841 = vsyncpa [#allocation5], 1
    %s842 = scalar_lea.sflag [#allocation5], 1
    %843 = vsyncpa %s842, 1

</llo_original>
